<compile_context>
chip_gen: v7x
topology: tpu7x:2x2x1
jax: 0.10.0
libtpu: 0.0.40
codegen_flags: <defaults>
</compile_context>

<pallas_src>
import math

import jax
import jax.numpy as jnp
from jax.experimental import pallas as pl
from jax.experimental.pallas import tpu as pltpu

_LANE = 128  # lanes per vreg (last dim)


def _make_pe(d_model: int, max_len: int = 5000, dtype=jnp.float32) -> jnp.ndarray:
    """Sinusoidal positional-encoding table, shape (max_len, d_model).

    Built once in plain JAX (mirrors the buffer created in __init__). Build it
    directly in the activation dtype (e.g. bf16) so the kernel never has to
    cast it per call. Safe for odd d_model.
    """
    position = jnp.arange(max_len, dtype=jnp.float32)[:, None]               # (L, 1)
    div_term = jnp.exp(
        jnp.arange(0, d_model, 2, dtype=jnp.float32)
        * (-math.log(10000.0) / d_model)
    )                                                                        # (ceil(D/2),)
    angles = position * div_term                                             # (L, ceil(D/2))
    pe = jnp.zeros((max_len, d_model), dtype=jnp.float32)
    pe = pe.at[:, 0::2].set(jnp.sin(angles))
    pe = pe.at[:, 1::2].set(jnp.cos(angles[:, : d_model // 2]))              # odd-D safe
    return pe.astype(dtype)


def _add_pe_kernel(x_ref, pe_ref, o_ref):
    # x_ref: (tr, tc) tile of flattened activations; pe_ref: (1, tc) table tile.
    # Pure VPU broadcasted add; pe tile stays resident across the batch axis.
    o_ref[...] = x_ref[...] + pe_ref[...]


def _round_up(v: int, m: int) -> int:
    return ((v + m - 1) // m) * m


def _round_down(v: int, m: int) -> int:
    return (v // m) * m


def _device_tuning():
    """(target_block_bytes, multi_tensorcore) for the local TPU generation."""
    try:
        kind = jax.devices()[0].device_kind.lower()
    except Exception:  # pragma: no cover - CPU / unknown backend
        kind = ""
    if "v7" in kind:
        return 4 * 1024 * 1024, True     # fast HBM, 2 TCs/chip
    if "v6" in kind:
        return 4 * 1024 * 1024, False    # 32 MiB scoped default, plenty of room
    # v5e and unknown: 2 MiB is already past the roofline knee and stays well
    # inside the 16 MiB scoped-VMEM default.
    return 2 * 1024 * 1024, False


def _choose_block(num_rows: int, num_cols: int, itemsize: int, target_bytes: int):
    """(row_tile, col_tile, sublane): lane/sublane legal, ~target bytes, and
    balanced so trailing tiles aren't mostly padding."""
    sublane = max(8, 32 // itemsize)                 # 8 f32, 16 bf16, 32 int8/fp8
    target_elems = max(_LANE * sublane, target_bytes // itemsize)

    # Lane (last-dim) tile: full width if it fits next to `sublane` rows,
    # otherwise a balanced multiple of 128 lanes.
    max_tc = max(_LANE, _round_down(target_elems // sublane, _LANE))
    if num_cols <= max_tc:
        tc = num_cols
    else:
        n_col = pl.cdiv(num_cols, max_tc)
        tc = _round_up(pl.cdiv(num_cols, n_col), _LANE)          # balanced, <= max_tc

    # Sublane (row) tile over the batch axis.
    if num_rows <= sublane:
        tr = num_rows
    else:
        rows_budget = max(sublane, target_elems // tc)
        if num_rows <= rows_budget:
            tr = num_rows
        else:
            base = max(sublane, _round_down(rows_budget, sublane))
            n_row = pl.cdiv(num_rows, base)
            tr = _round_up(pl.cdiv(num_rows, n_row), sublane)    # balanced
    return tr, tc, sublane


def positional_encoding(x: jnp.ndarray, pe: jnp.ndarray,
                        donate_x: bool = True) -> jnp.ndarray:
    """x: (B, S, D); pe: (max_len, D) table from _make_pe. Returns x + pe[:S]."""
    B, S, D = x.shape
    max_len, d_model = pe.shape
    if d_model != D:
        raise ValueError(f"d_model mismatch: x has {D}, pe table has {d_model}")
    if S > max_len:
        raise ValueError(f"sequence length {S} exceeds pe max_len {max_len}")
    if pe.dtype != x.dtype:
        # Prefer building the table in the activation dtype up front: this
        # fallback materializes a full (max_len, D) cast in HBM every call.
        pe = pe.astype(x.dtype)

    itemsize = x.dtype.itemsize
    target_bytes, multi_core = _device_tuning()

    N = S * D                                        # flattened (seq, d_model) width
    tr, tc, sublane = _choose_block(B, N, itemsize, target_bytes)

    # v7x megacore: don't leave a non-trivial problem as a single grid step, or
    # only one of the two TensorCores runs the whole copy.
    if (multi_core and pl.cdiv(N, tc) * pl.cdiv(B, tr) == 1
            and B * N * itemsize >= (512 << 10)):
        if N >= 2 * _LANE:
            tc = _round_up(pl.cdiv(N, 2), _LANE)
        elif B >= 2 * sublane:
            tr = _round_up(pl.cdiv(B, 2), sublane)

    x2 = x.reshape(B, N)                             # free reshape (contiguous)
    pe2 = pe.reshape(1, max_len * D)                 # free reshape, no slice copy
    if tc == N and (N % _LANE != 0) and (max_len * D != N):
        # Small lane-misaligned width: give pe exactly N columns so the
        # full-width block is layout-legal (tiny one-off copy, cold path).
        pe2 = pe2[:, :N]
    # Note: partial column tiles over-read pe positions >= S; those lanes are
    # never written back (benign).

    # Column tiles outer, batch tiles inner -> pe tile DMA'd once per column.
    grid = (pl.cdiv(N, tc), pl.cdiv(B, tr))

    # Explicit VMEM budget: x + out double-buffered, pe sublane-padded (1->sublane).
    x_block_bytes = _round_up(max(tr, 1), sublane) * tc * itemsize
    pe_block_bytes = sublane * tc * itemsize
    footprint = 4 * x_block_bytes + 2 * pe_block_bytes
    vmem_limit = int(min(max(footprint + (8 << 20), 32 << 20), 48 << 20))

    bytes_accessed = 2 * B * N * itemsize + min(N, max_len * D) * itemsize
    cost = pl.CostEstimate(flops=B * N, transcendentals=0,
                           bytes_accessed=bytes_accessed)

    def run(pe_pipeline_mode):
        if pe_pipeline_mode is None:
            pe_spec = pl.BlockSpec((1, tc), lambda j, i: (0, j))
        else:
            # Single-buffer the pe tile: its block index only changes on the
            # outer (column) axis, so the default second buffer is pure
            # sublane-padded VMEM waste (~8x the real data).
            pe_spec = pl.BlockSpec((1, tc), lambda j, i: (0, j),
                                   pipeline_mode=pe_pipeline_mode)
        out2 = pl.pallas_call(
            _add_pe_kernel,
            out_shape=jax.ShapeDtypeStruct((B, N), x.dtype),
            grid_spec=pltpu.PrefetchScalarGridSpec(
                num_scalar_prefetch=0,
                grid=grid,
                in_specs=[
                    pl.BlockSpec((tr, tc), lambda j, i: (i, j)),   # x tile
                    pe_spec,                                       # pe tile (batch-invariant)
                ],
                out_specs=pl.BlockSpec((tr, tc), lambda j, i: (i, j)),
            ),
            compiler_params=pltpu.CompilerParams(
                dimension_semantics=("parallel", "parallel"),
                vmem_limit_bytes=vmem_limit,
            ),
            cost_estimate=cost,
            input_output_aliases=({0: 0} if donate_x else {}),
        )(x2, pe2)
        return jax.block_until_ready(out2)

    buffered = getattr(pl, "Buffered", None)
    if buffered is not None:
        try:
            out2 = run(buffered(1))
        except Exception:
            # Older JAX without pipeline_mode support: fall back to default
            # double-buffering (correct, just uses a bit more VMEM).
            out2 = run(None)
    else:
        out2 = run(None)

    return out2.reshape(B, S, D)


if __name__ == "__main__":
    # Small shapes consistent with the module: batch=2, seq=8, d_model=32.
    B, S, D = 2, 8, 32
    MAX_LEN = 64   # module default is 5000; any max_len >= S works

    key = jax.random.PRNGKey(0)
    x = jax.random.normal(key, (B, S, D), dtype=jnp.float32)
    pe = _make_pe(D, MAX_LEN, dtype=x.dtype)       # table built in activation dtype

    # Reference computed BEFORE the kernel (the kernel may alias/donate x).
    ref = x + pe[None, :S, :]

    out = positional_encoding(x, pe)
    out = jax.block_until_ready(out)

    assert out.shape == (B, S, D)
    assert jnp.allclose(out, ref, atol=1e-6), "mismatch vs reference"

    print("KERNEL_OK")
</pallas_src>

<mosaic_0001>
module attributes {stable_mosaic.version = 11 : i64} {
  func.func @_add_pe_kernel(%arg0: i32, %arg1: i32, %arg2: memref<2x256xf32, #tpu.memory_space<vmem>>, %arg3: memref<1x256xf32, #tpu.memory_space<vmem>>, %arg4: memref<2x256xf32, #tpu.memory_space<vmem>>) attributes {dimension_semantics = [#tpu.dimension_semantics<parallel>, #tpu.dimension_semantics<parallel>], iteration_bounds = array<i64: 1, 1>, scalar_prefetch = 0 : i64, scratch_operands = 0 : i64, tpu.core_type = #tpu.core_type<tc>, window_params = [{transform_indices = @transform_0, window_bounds = array<i64: 2, 256>}, {pipeline_mode = #tpu.pipeline_mode<synchronous>, transform_indices = @transform_1, window_bounds = array<i64: 1, 256>}, {transform_indices = @transform_2, window_bounds = array<i64: 2, 256>}]} {
    %c0 = arith.constant 0 : index
    %c0_0 = arith.constant 0 : index
    %0 = vector.load %arg2[%c0, %c0_0] : memref<2x256xf32, #tpu.memory_space<vmem>>, vector<2x256xf32>
    %c0_1 = arith.constant 0 : index
    %c0_2 = arith.constant 0 : index
    %1 = vector.load %arg3[%c0_1, %c0_2] : memref<1x256xf32, #tpu.memory_space<vmem>>, vector<1x256xf32>
    %2 = vector.broadcast %1 : vector<1x256xf32> to vector<2x256xf32>
    %3 = arith.addf %0, %2 : vector<2x256xf32>
    %c0_3 = arith.constant 0 : index
    %c0_4 = arith.constant 0 : index
    %4 = vector.load %arg4[%c0_3, %c0_4] : memref<2x256xf32, #tpu.memory_space<vmem>>, vector<2x256xf32>
    tpu.vector_store %arg4[%c0_3, %c0_4], %3 {strides = array<i32>} : memref<2x256xf32, #tpu.memory_space<vmem>>, vector<2x256xf32>,
    return
  }
  func.func @transform_0(%arg0: i32, %arg1: i32) -> (i32, i32) {
    %c0_i32 = arith.constant 0 : i32
    return %arg1, %arg0 : i32, i32
  }
  func.func @transform_1(%arg0: i32, %arg1: i32) -> (i32, i32) {
    %c0_i32 = arith.constant 0 : i32
    %c0_i32_0 = arith.constant 0 : i32
    return %c0_i32, %arg0 : i32, i32
  }
  func.func @transform_2(%arg0: i32, %arg1: i32) -> (i32, i32) {
    %c0_i32 = arith.constant 0 : i32
    return %arg1, %arg0 : i32, i32
  }
}

module attributes {stable_mosaic.version = 11 : i64} {
  func.func @_add_pe_kernel(%arg0: i32, %arg1: i32, %arg2: memref<2x256xf32, #tpu.memory_space<vmem>>, %arg3: memref<1x256xf32, #tpu.memory_space<vmem>>, %arg4: memref<2x256xf32, #tpu.memory_space<vmem>>) attributes {dimension_semantics = [#tpu.dimension_semantics<parallel>, #tpu.dimension_semantics<parallel>], iteration_bounds = array<i64: 1, 1>, scalar_prefetch = 0 : i64, scratch_operands = 0 : i64, tpu.core_type = #tpu.core_type<tc>, window_params = [{transform_indices = @transform_0, window_bounds = array<i64: 2, 256>}, {transform_indices = @transform_1, window_bounds = array<i64: 1, 256>}, {transform_indices = @transform_2, window_bounds = array<i64: 2, 256>}]} {
    %c0 = arith.constant 0 : index
    %c0_0 = arith.constant 0 : index
    %0 = vector.load %arg2[%c0, %c0_0] : memref<2x256xf32, #tpu.memory_space<vmem>>, vector<2x256xf32>
    %c0_1 = arith.constant 0 : index
    %c0_2 = arith.constant 0 : index
    %1 = vector.load %arg3[%c0_1, %c0_2] : memref<1x256xf32, #tpu.memory_space<vmem>>, vector<1x256xf32>
    %2 = vector.broadcast %1 : vector<1x256xf32> to vector<2x256xf32>
    %3 = arith.addf %0, %2 : vector<2x256xf32>
    %c0_3 = arith.constant 0 : index
    %c0_4 = arith.constant 0 : index
    %4 = vector.load %arg4[%c0_3, %c0_4] : memref<2x256xf32, #tpu.memory_space<vmem>>, vector<2x256xf32>
    tpu.vector_store %arg4[%c0_3, %c0_4], %3 {strides = array<i32>} : memref<2x256xf32, #tpu.memory_space<vmem>>, vector<2x256xf32>,
    return
  }
  func.func @transform_0(%arg0: i32, %arg1: i32) -> (i32, i32) {
    %c0_i32 = arith.constant 0 : i32
    return %arg1, %arg0 : i32, i32
  }
  func.func @transform_1(%arg0: i32, %arg1: i32) -> (i32, i32) {
    %c0_i32 = arith.constant 0 : i32
    %c0_i32_0 = arith.constant 0 : i32
    return %c0_i32, %arg0 : i32, i32
  }
  func.func @transform_2(%arg0: i32, %arg1: i32) -> (i32, i32) {
    %c0_i32 = arith.constant 0 : i32
    return %arg1, %arg0 : i32, i32
  }
}

</mosaic_0001>

<llo_original>
// kernel: tpu_custom_call.1
$region0: #{tpu_custom_call.1}
  #allocation0 [shape = 'u32[]', space=smem, size = 0x4, offset = 0x4, fixed_abs, tag = 'smem constant byte address 0x4 - core index']
  #allocation1 [shape = 'u32[144,128]{1,0:T(1,128)}', space=vmem, size = 0x12000, scoped, tag = 'internal scratch']
  %s0 = inlined_call_operand.hbm [shape: f32[2,256], index: 0, kind: input, shape index: {}, may-alias: {0,2}]
  %s1 = inlined_call_operand.hbm [shape: f32[1,2048], index: 1, kind: input, shape index: {}]
  %s2 = inlined_call_operand.hbm [shape: f32[2,256], index: 2, kind: output, shape index: {}, may-alias: {0,2}]
  %s3 = sld [smem:[#allocation0]]
  $region26: #{tpu_custom_call.1} parent=0
    _
  %s5 = ssub.s32 1, %s3
  %s6 = scalar_select 0, %s5, %s3
  $region1: #{tpu_custom_call.1} parent=0
    #allocation2 [shape = 'u8[2048]{0}', space=vmem, size = 0x800, scoped, tag = 'input window, operand 0, single buffered']
    #allocation3 [shape = 's32[1]{0}', space=sflag, size = 0x4, scoped, tag = 'scoped memory for tpu_custom_call.1']
    #allocation4 [shape = 's32[1]{0}', space=sflag, size = 0x4, scoped, tag = 'scoped memory for tpu_custom_call.1']
    #allocation5 [shape = 'u8[1024]{0}', space=vmem, size = 0x400, scoped, tag = 'input window, operand 1, single buffered']
    #allocation6 [shape = 's32[1]{0}', space=sflag, size = 0x4, scoped, tag = 'scoped memory for tpu_custom_call.1']
    #allocation7 [shape = 'u8[2048]{0}', space=vmem, size = 0x800, scoped, tag = 'output window, operand 0, single buffered']
    %7 = vsyncpa [#allocation3], 0
    %8 = vsyncpa [#allocation6], 0
    %9 = vsyncpa [#allocation4], 0
    // Predicated region
    $region2: #{tpu_custom_call.1} parent=1 // pred_check
      _
    $region3: #{tpu_custom_call.1} parent=1 // pred_check_branch
      %11 = sbr.rel (0) target = $region5
    $region4: #{tpu_custom_call.1} parent=1 // pred_region
      %s13 = ssub.s32 64, 64
      %14 = vsyncadd [#allocation3], %s13
      %s16 = sshll.u32 [#allocation2], 4
      %s17 = int_to_ptr.vmem [resolvable:$true] %s16
      %19 = dma.hbm_to_vmem [thread:$0]  %s0, 64, %s17, [#allocation3]
    $region5: #{tpu_custom_call.1} parent=1 // pred_fallthru
      _
    // Predicated region
    $region6: #{tpu_custom_call.1} parent=1 // pred_check
      _
    $region7: #{tpu_custom_call.1} parent=1 // pred_check_branch
      %21 = sbr.rel (0) target = $region9
    $region8: #{tpu_custom_call.1} parent=1 // pred_region
      %s23 = ssub.s32 32, 32
      %24 = vsyncadd [#allocation6], %s23
      %s26 = sshll.u32 [#allocation5], 4
      %s27 = int_to_ptr.vmem [resolvable:$true] %s26
      %29 = dma.hbm_to_vmem [thread:$0]  %s1, 32, %s27, [#allocation6]
    $region9: #{tpu_custom_call.1} parent=1 // pred_fallthru
      _
    // Predicated region
    $region10: #{tpu_custom_call.1} parent=1 // pred_check
      _
    $region11: #{tpu_custom_call.1} parent=1 // pred_check_branch
      %31 = sbr.rel (0) target = $region13
    $region12: #{tpu_custom_call.1} parent=1 // pred_region
      %32 = dma.done [#allocation3], 64
    $region13: #{tpu_custom_call.1} parent=1 // pred_fallthru
      _
    // Predicated region
    $region14: #{tpu_custom_call.1} parent=1 // pred_check
      _
    $region15: #{tpu_custom_call.1} parent=1 // pred_check_branch
      %34 = sbr.rel (0) target = $region17
    $region16: #{tpu_custom_call.1} parent=1 // pred_region
      %35 = dma.done [#allocation6], 32
    $region17: #{tpu_custom_call.1} parent=1 // pred_fallthru
      _
    %v36 = vld [vmem:[#allocation2] sm:$0xf]
    %v37 = vld [vmem:[#allocation5] sm:$0x3]
    %v39 = vlaneseq
    %v40 = vshrl.u32 %v39, 7
    %v41 = vsub.s32 0, %v40
    %v42 = vrot.slane %v37, %v41
    %v43 = vlaneseq
    %v44 = vshrl.u32 %v43, 7
    %v45 = vsub.s32 1, %v44
    %v46 = vrot.slane %v37, %v45
    %v47 = vcombine.low %v42, %v46
    %v49 = vunpack.c.l.s4 1983009808
    %v50 = vunpack.c.0.s8 %v49
    %v51 = vlaneseq
    %v52 = vshrl.u32 %v51, 7
    %v53 = vsub.s32 %v50, %v52
    %v54 = vrot.slane %v47, %v53
    %v56 = vadd.f32 %v36, %v54
    %57 = vst [vmem:[#allocation7] sm:$0xf] %v56
    // Predicated region
    $region18: #{tpu_custom_call.1} parent=1 // pred_check
      _
    $region19: #{tpu_custom_call.1} parent=1 // pred_check_branch
      %59 = sbr.rel (0) target = $region21
    $region20: #{tpu_custom_call.1} parent=1 // pred_region
      %s61 = ssub.s32 64, 64
      %62 = vsyncadd [#allocation4], %s61
      %s64 = sshll.u32 [#allocation7], 4
      %s65 = int_to_ptr.vmem [resolvable:$true] %s64
      %67 = dma.vmem_to_hbm [thread:$0]  %s65, 64, %s2, [#allocation4]
    $region21: #{tpu_custom_call.1} parent=1 // pred_fallthru
      _
    // Predicated region
    $region22: #{tpu_custom_call.1} parent=1 // pred_check
      _
    $region23: #{tpu_custom_call.1} parent=1 // pred_check_branch
      %69 = sbr.rel (0) target = $region25
    $region24: #{tpu_custom_call.1} parent=1 // pred_region
      %70 = dma.done [#allocation4], 64
    $region25: #{tpu_custom_call.1} parent=1 // pred_fallthru
      _
    %71 = vsyncpa [#allocation3], 1
    %72 = vsyncpa [#allocation6], 1
    %73 = vsyncpa [#allocation4], 1

// kernel: tpu_custom_call.1
$region0: #{tpu_custom_call.1}
  #allocation0 [shape = 'u32[]', space=smem, size = 0x4, offset = 0x4, fixed_abs, tag = 'smem constant byte address 0x4 - core index']
  #allocation1 [shape = 'u32[144,128]{1,0:T(1,128)}', space=vmem, size = 0x12000, scoped, tag = 'internal scratch']
  %s0 = inlined_call_operand.hbm [shape: f32[2,256], index: 0, kind: input, shape index: {}, may-alias: {0,2}]
  %s1 = inlined_call_operand.hbm [shape: f32[1,2048], index: 1, kind: input, shape index: {}]
  %s2 = inlined_call_operand.hbm [shape: f32[2,256], index: 2, kind: output, shape index: {}, may-alias: {0,2}]
  %s3 = sld [smem:[#allocation0]]
  $region26: #{tpu_custom_call.1} parent=0
    _
  %s5 = ssub.s32 1, %s3
  %s6 = scalar_select 0, %s5, %s3
  $region1: #{tpu_custom_call.1} parent=0
    #allocation2 [shape = 'u8[2048]{0}', space=vmem, size = 0x800, scoped, tag = 'input window, operand 0, single buffered']
    #allocation3 [shape = 's32[1]{0}', space=sflag, size = 0x4, scoped, tag = 'scoped memory for tpu_custom_call.1']
    #allocation4 [shape = 's32[1]{0}', space=sflag, size = 0x4, scoped, tag = 'scoped memory for tpu_custom_call.1']
    #allocation5 [shape = 'u8[1024]{0}', space=vmem, size = 0x400, scoped, tag = 'input window, operand 1, single buffered']
    #allocation6 [shape = 's32[1]{0}', space=sflag, size = 0x4, scoped, tag = 'scoped memory for tpu_custom_call.1']
    #allocation7 [shape = 'u8[2048]{0}', space=vmem, size = 0x800, scoped, tag = 'output window, operand 0, single buffered']
    %7 = vsyncpa [#allocation3], 0
    %8 = vsyncpa [#allocation6], 0
    %9 = vsyncpa [#allocation4], 0
    // Predicated region
    $region2: #{tpu_custom_call.1} parent=1 // pred_check
      _
    $region3: #{tpu_custom_call.1} parent=1 // pred_check_branch
      %11 = sbr.rel (0) target = $region5
    $region4: #{tpu_custom_call.1} parent=1 // pred_region
      %s13 = ssub.s32 64, 64
      %14 = vsyncadd [#allocation3], %s13
      %s16 = sshll.u32 [#allocation2], 4
      %s17 = int_to_ptr.vmem [resolvable:$true] %s16
      %19 = dma.hbm_to_vmem [thread:$0]  %s0, 64, %s17, [#allocation3]
    $region5: #{tpu_custom_call.1} parent=1 // pred_fallthru
      _
    // Predicated region
    $region6: #{tpu_custom_call.1} parent=1 // pred_check
      _
    $region7: #{tpu_custom_call.1} parent=1 // pred_check_branch
      %21 = sbr.rel (0) target = $region9
    $region8: #{tpu_custom_call.1} parent=1 // pred_region
      %s23 = ssub.s32 32, 32
      %24 = vsyncadd [#allocation6], %s23
      %s26 = sshll.u32 [#allocation5], 4
      %s27 = int_to_ptr.vmem [resolvable:$true] %s26
      %29 = dma.hbm_to_vmem [thread:$0]  %s1, 32, %s27, [#allocation6]
    $region9: #{tpu_custom_call.1} parent=1 // pred_fallthru
      _
    // Predicated region
    $region10: #{tpu_custom_call.1} parent=1 // pred_check
      _
    $region11: #{tpu_custom_call.1} parent=1 // pred_check_branch
      %31 = sbr.rel (0) target = $region13
    $region12: #{tpu_custom_call.1} parent=1 // pred_region
      %32 = dma.done [#allocation3], 64
    $region13: #{tpu_custom_call.1} parent=1 // pred_fallthru
      _
    // Predicated region
    $region14: #{tpu_custom_call.1} parent=1 // pred_check
      _
    $region15: #{tpu_custom_call.1} parent=1 // pred_check_branch
      %34 = sbr.rel (0) target = $region17
    $region16: #{tpu_custom_call.1} parent=1 // pred_region
      %35 = dma.done [#allocation6], 32
    $region17: #{tpu_custom_call.1} parent=1 // pred_fallthru
      _
    %v36 = vld [vmem:[#allocation2] sm:$0xf]
    %v37 = vld [vmem:[#allocation5] sm:$0x3]
    %v39 = vlaneseq
    %v40 = vshrl.u32 %v39, 7
    %v41 = vsub.s32 0, %v40
    %v42 = vrot.slane %v37, %v41
    %v43 = vlaneseq
    %v44 = vshrl.u32 %v43, 7
    %v45 = vsub.s32 1, %v44
    %v46 = vrot.slane %v37, %v45
    %v47 = vcombine.low %v42, %v46
    %v49 = vunpack.c.l.s4 1983009808
    %v50 = vunpack.c.0.s8 %v49
    %v51 = vlaneseq
    %v52 = vshrl.u32 %v51, 7
    %v53 = vsub.s32 %v50, %v52
    %v54 = vrot.slane %v47, %v53
    %v56 = vadd.f32 %v36, %v54
    %57 = vst [vmem:[#allocation7] sm:$0xf] %v56
    // Predicated region
    $region18: #{tpu_custom_call.1} parent=1 // pred_check
      _
    $region19: #{tpu_custom_call.1} parent=1 // pred_check_branch
      %59 = sbr.rel (0) target = $region21
    $region20: #{tpu_custom_call.1} parent=1 // pred_region
      %s61 = ssub.s32 64, 64
      %62 = vsyncadd [#allocation4], %s61
      %s64 = sshll.u32 [#allocation7], 4
      %s65 = int_to_ptr.vmem [resolvable:$true] %s64
      %67 = dma.vmem_to_hbm [thread:$0]  %s65, 64, %s2, [#allocation4]
    $region21: #{tpu_custom_call.1} parent=1 // pred_fallthru
      _
    // Predicated region
    $region22: #{tpu_custom_call.1} parent=1 // pred_check
      _
    $region23: #{tpu_custom_call.1} parent=1 // pred_check_branch
      %69 = sbr.rel (0) target = $region25
    $region24: #{tpu_custom_call.1} parent=1 // pred_region
      %70 = dma.done [#allocation4], 64
    $region25: #{tpu_custom_call.1} parent=1 // pred_fallthru
      _
    %71 = vsyncpa [#allocation3], 1
    %72 = vsyncpa [#allocation6], 1
    %73 = vsyncpa [#allocation4], 1

</llo_original>
